<compile_context>
chip_gen: v6e
topology: v6e:2x2x1
jax: 0.10.0
libtpu: 0.0.40
codegen_flags: <defaults>
</compile_context>

<pallas_src>
import functools

import jax
import jax.numpy as jnp
from jax.experimental import pallas as pl
from jax.experimental.pallas import tpu as pltpu

LN_EPS = 1e-5  # PyTorch nn.LayerNorm default

_MAX_TM = 1024                  # upper bound on row-tile size
_TILE_VMEM_BUDGET = 24 << 20    # bytes for double-buffered tiles (safe on v5e/v6e/v7x)
_VMEM_LIMIT_BYTES = 48 << 20    # explicit scoped-VMEM limit (<= v7x 64 MiB physical)


def _pick_tm(M, H, itemsize, n_big_operands):
    """Largest row tile with n_big_operands x 2(double-buffer) tiles under budget."""
    per_row = n_big_operands * 2 * H * itemsize
    cap = max(8, _TILE_VMEM_BUDGET // max(per_row, 1))
    tm = min(M, cap, _MAX_TM)
    if tm < M:
        # (8, 128) tiling constraint: non-full-extent block dims must be /8.
        tm = max(8, (tm // 8) * 8)
    return tm


# ----------------------------- Kernel 1: LayerNorm -----------------------------
def _layernorm_kernel(x_ref, g_ref, b_ref, o_ref):
    x = x_ref[...].astype(jnp.float32)                        # (tm, H)
    mean = jnp.mean(x, axis=-1, keepdims=True)
    var = jnp.mean(jnp.square(x - mean), axis=-1, keepdims=True)  # biased var (PyTorch LN)
    xn = (x - mean) * jax.lax.rsqrt(var + LN_EPS)
    out = xn * g_ref[...].astype(jnp.float32) + b_ref[...].astype(jnp.float32)
    o_ref[...] = out.astype(o_ref.dtype)


def layernorm_pallas(x2d, gamma, beta):
    M, H = x2d.shape
    tm = _pick_tm(M, H, x2d.dtype.itemsize, n_big_operands=2)   # x tile + out tile
    g = gamma.reshape(1, H)
    b = beta.reshape(1, H)
    return pl.pallas_call(
        _layernorm_kernel,
        out_shape=jax.ShapeDtypeStruct((M, H), x2d.dtype),
        grid=(pl.cdiv(M, tm),),
        in_specs=[
            pl.BlockSpec((tm, H), lambda i: (i, 0)),
            pl.BlockSpec((1, H), lambda i: (0, 0)),   # grid-invariant affine params
            pl.BlockSpec((1, H), lambda i: (0, 0)),
        ],
        out_specs=pl.BlockSpec((tm, H), lambda i: (i, 0)),
        compiler_params=pltpu.CompilerParams(
            dimension_semantics=("parallel",),
            vmem_limit_bytes=_VMEM_LIMIT_BYTES,
        ),
    )(x2d, g, b)


# ------------------- Kernel 2: dropout(y) + residual add x ---------------------
def _hash_u32(x):
    # lowbias32 integer hash — pure VPU int ops (xor/shift/mul), no float converts.
    x = x ^ (x >> 16)
    x = x * jnp.uint32(0x7FEB352D)
    x = x ^ (x >> 15)
    x = x * jnp.uint32(0x846CA68B)
    x = x ^ (x >> 16)
    return x


def _residual_dropout_kernel(seed_ref, x_ref, y_ref, o_ref, *, p, tm, H):
    x = x_ref[...]
    y = y_ref[...]
    if p <= 0.0:
        o_ref[...] = x + y.astype(x.dtype)
        return
    if p >= 1.0:                       # everything dropped; avoid 1/(1-p) blowup
        o_ref[...] = x
        return
    # Counter-based PRNG: hash(global element index ^ mixed seed).
    row = jax.lax.broadcasted_iota(jnp.int32, (tm, H), 0)
    col = jax.lax.broadcasted_iota(jnp.int32, (tm, H), 1)
    base = pl.program_id(0) * tm
    idx = (base + row).astype(jnp.uint32) * jnp.uint32(H) + col.astype(jnp.uint32)
    seed_mix = seed_ref[0].astype(jnp.uint32) * jnp.uint32(0x9E3779B9)
    bits = _hash_u32(idx ^ seed_mix)
    # Integer-threshold compare: keep with probability (1 - p).
    thresh = jnp.uint32(min(int(round(p * 2.0 ** 32)), 2 ** 32 - 1))
    keep = bits >= thresh
    scale = jnp.asarray(1.0 / (1.0 - p), dtype=y.dtype)   # inverted dropout (train mode)
    y = jnp.where(keep, y * scale, jnp.zeros_like(y))
    o_ref[...] = x + y.astype(x.dtype)


def residual_dropout_pallas(x2d, y2d, *, p, seed):
    M, H = x2d.shape
    tm = _pick_tm(M, H, x2d.dtype.itemsize, n_big_operands=3)   # x, y, out tiles
    seed_arr = jnp.asarray([seed], dtype=jnp.int32)
    kern = functools.partial(_residual_dropout_kernel, p=float(p), tm=tm, H=H)
    return pl.pallas_call(
        kern,
        out_shape=jax.ShapeDtypeStruct((M, H), x2d.dtype),
        grid_spec=pltpu.PrefetchScalarGridSpec(
            num_scalar_prefetch=1,
            grid=(pl.cdiv(M, tm),),
            in_specs=[
                pl.BlockSpec((tm, H), lambda i, s: (i, 0)),
                pl.BlockSpec((tm, H), lambda i, s: (i, 0)),
            ],
            out_specs=pl.BlockSpec((tm, H), lambda i, s: (i, 0)),
        ),
        compiler_params=pltpu.CompilerParams(
            dimension_semantics=("parallel",),   # seed derived from program_id -> core-safe
            vmem_limit_bytes=_VMEM_LIMIT_BYTES,
        ),
    )(seed_arr, x2d, y2d)


# ------------------------------ Module wrapper ---------------------------------
def sublayer_connection(x, gamma, beta, sublayer, *, p, seed):
    """x + dropout(sublayer(LayerNorm(x))) for x of shape (B, S, H)."""
    B, S, H = x.shape
    x2d = x.reshape(B * S, H)
    normed = layernorm_pallas(x2d, gamma, beta)
    # TODO(synk): `sublayer` is an arbitrary user callable in the PyTorch module;
    # it stays as plain JAX between the two Pallas kernels.
    y = sublayer(normed.reshape(B, S, H)).reshape(B * S, H)
    out = residual_dropout_pallas(x2d, y, p=p, seed=seed)
    return out.reshape(B, S, H)


if __name__ == "__main__":
    B, S, H = 2, 8, 128
    p = 0.1

    key = jax.random.PRNGKey(0)
    kx, kw = jax.random.split(key)
    x = jax.random.normal(kx, (B, S, H), dtype=jnp.float32)

    # nn.LayerNorm(layerNormSize) default init: weight=1, bias=0.
    gamma = jnp.ones((H,), dtype=jnp.float32)
    beta = jnp.zeros((H,), dtype=jnp.float32)

    # Example sublayer (arbitrary callable in the PyTorch module): linear + ReLU.
    W = 0.02 * jax.random.normal(kw, (H, H), dtype=jnp.float32)
    b = jnp.zeros((H,), dtype=jnp.float32)
    sublayer = lambda z: jax.nn.relu(z @ W + b)

    out = sublayer_connection(x, gamma, beta, sublayer, p=p, seed=42)
    jax.block_until_ready(out)
    assert out.shape == (B, S, H) and out.dtype == jnp.float32
    assert bool(jnp.all(jnp.isfinite(out)))
    print("KERNEL_OK")
</pallas_src>

<mosaic_0001>
module attributes {stable_mosaic.version = 11 : i64} {
  func.func @_layernorm_kernel(%arg0: i32, %arg1: memref<16x128xf32, #tpu.memory_space<vmem>>, %arg2: memref<1x128xf32, #tpu.memory_space<vmem>>, %arg3: memref<1x128xf32, #tpu.memory_space<vmem>>, %arg4: memref<16x128xf32, #tpu.memory_space<vmem>>) attributes {dimension_semantics = [#tpu.dimension_semantics<parallel>], iteration_bounds = array<i64: 1>, scalar_prefetch = 0 : i64, scratch_operands = 0 : i64, tpu.core_type = #tpu.core_type<tc>, window_params = [{transform_indices = @transform_0, window_bounds = array<i64: 16, 128>}, {pipeline_mode = #tpu.pipeline_mode<synchronous>, transform_indices = @transform_1, window_bounds = array<i64: 1, 128>}, {pipeline_mode = #tpu.pipeline_mode<synchronous>, transform_indices = @transform_2, window_bounds = array<i64: 1, 128>}, {transform_indices = @transform_3, window_bounds = array<i64: 16, 128>}]} {
    %c0 = arith.constant 0 : index
    %c0_0 = arith.constant 0 : index
    %0 = vector.load %arg1[%c0, %c0_0] : memref<16x128xf32, #tpu.memory_space<vmem>>, vector<16x128xf32>
    %cst = arith.constant dense<0.000000e+00> : vector<16xf32>
    %1 = vector.multi_reduction <add>, %0, %cst [1] : vector<16x128xf32> to vector<16xf32>
    %2 = vector.shape_cast %1 : vector<16xf32> to vector<16x1xf32>
    %cst_1 = arith.constant 1.280000e+02 : f32
    %3 = vector.broadcast %cst_1 : f32 to vector<16x1xf32>
    %4 = arith.divf %2, %3 : vector<16x1xf32>
    %5 = vector.broadcast %4 : vector<16x1xf32> to vector<16x128xf32>
    %6 = arith.subf %0, %5 : vector<16x128xf32>
    %7 = arith.mulf %6, %6 : vector<16x128xf32>
    %cst_2 = arith.constant dense<0.000000e+00> : vector<16xf32>
    %8 = vector.multi_reduction <add>, %7, %cst_2 [1] : vector<16x128xf32> to vector<16xf32>
    %9 = vector.shape_cast %8 : vector<16xf32> to vector<16x1xf32>
    %cst_3 = arith.constant 1.280000e+02 : f32
    %10 = vector.broadcast %cst_3 : f32 to vector<16x1xf32>
    %11 = arith.divf %9, %10 : vector<16x1xf32>
    %12 = vector.broadcast %4 : vector<16x1xf32> to vector<16x128xf32>
    %13 = arith.subf %0, %12 : vector<16x128xf32>
    %cst_4 = arith.constant 9.99999974E-6 : f32
    %14 = vector.broadcast %cst_4 : f32 to vector<16x1xf32>
    %15 = arith.addf %11, %14 : vector<16x1xf32>
    %16 = math.rsqrt %15 : vector<16x1xf32>
    %17 = vector.broadcast %16 : vector<16x1xf32> to vector<16x128xf32>
    %18 = arith.mulf %13, %17 : vector<16x128xf32>
    %c0_5 = arith.constant 0 : index
    %c0_6 = arith.constant 0 : index
    %19 = vector.load %arg2[%c0_5, %c0_6] : memref<1x128xf32, #tpu.memory_space<vmem>>, vector<1x128xf32>
    %20 = vector.broadcast %19 : vector<1x128xf32> to vector<16x128xf32>
    %21 = arith.mulf %18, %20 : vector<16x128xf32>
    %c0_7 = arith.constant 0 : index
    %c0_8 = arith.constant 0 : index
    %22 = vector.load %arg3[%c0_7, %c0_8] : memref<1x128xf32, #tpu.memory_space<vmem>>, vector<1x128xf32>
    %23 = vector.broadcast %22 : vector<1x128xf32> to vector<16x128xf32>
    %24 = arith.addf %21, %23 : vector<16x128xf32>
    %c0_9 = arith.constant 0 : index
    %c0_10 = arith.constant 0 : index
    %25 = vector.load %arg4[%c0_9, %c0_10] : memref<16x128xf32, #tpu.memory_space<vmem>>, vector<16x128xf32>
    tpu.vector_store %arg4[%c0_9, %c0_10], %24 {strides = array<i32>} : memref<16x128xf32, #tpu.memory_space<vmem>>, vector<16x128xf32>,
    return
  }
  func.func @transform_0(%arg0: i32) -> (i32, i32) {
    %c0_i32 = arith.constant 0 : i32
    %c0_i32_0 = arith.constant 0 : i32
    return %arg0, %c0_i32 : i32, i32
  }
  func.func @transform_1(%arg0: i32) -> (i32, i32) {
    %c0_i32 = arith.constant 0 : i32
    %c0_i32_0 = arith.constant 0 : i32
    %c0_i32_1 = arith.constant 0 : i32
    return %c0_i32, %c0_i32_0 : i32, i32
  }
  func.func @transform_2(%arg0: i32) -> (i32, i32) {
    %c0_i32 = arith.constant 0 : i32
    %c0_i32_0 = arith.constant 0 : i32
    %c0_i32_1 = arith.constant 0 : i32
    return %c0_i32, %c0_i32_0 : i32, i32
  }
  func.func @transform_3(%arg0: i32) -> (i32, i32) {
    %c0_i32 = arith.constant 0 : i32
    %c0_i32_0 = arith.constant 0 : i32
    return %arg0, %c0_i32 : i32, i32
  }
}

</mosaic_0001>

<llo_original>
// kernel: tpu_custom_call.1
$region0: #{tpu_custom_call.1}
  #allocation0 [shape = 'u32[]', space=smem, size = 0x4, offset = 0x4, fixed_abs, tag = 'smem constant byte address 0x4 - core index']
  #allocation1 [shape = 'u32[144,128]{1,0:T(1,128)}', space=vmem, size = 0x12000, scoped, tag = 'internal scratch']
  %s0 = inlined_call_operand.hbm [shape: f32[16,128], index: 0, kind: input, shape index: {}]
  %s1 = inlined_call_operand.vmem [shape: f32[1,128], index: 1, kind: input, shape index: {}]
  %s2 = inlined_call_operand.vmem [shape: f32[1,128], index: 2, kind: input, shape index: {}]
  %s3 = inlined_call_operand.hbm [shape: f32[16,128], index: 3, kind: output, shape index: {}]
  %s4 = sld [smem:[#allocation0]]
  $region26: #{tpu_custom_call.1} parent=0
    _
  %s6 = ssub.s32 1, %s4
  %s7 = scalar_select 0, %s6, %s4
  $region1: #{tpu_custom_call.1} parent=0
    #allocation2 [shape = 'u8[8192]{0}', space=vmem, size = 0x2000, scoped, tag = 'input window, operand 0, single buffered']
    #allocation3 [shape = 's32[1]{0}', space=sflag, size = 0x4, scoped, tag = 'scoped memory for tpu_custom_call.1']
    #allocation4 [shape = 's32[1]{0}', space=sflag, size = 0x4, scoped, tag = 'scoped memory for tpu_custom_call.1']
    #allocation5 [shape = 'u8[8192]{0}', space=vmem, size = 0x2000, scoped, tag = 'output window, operand 0, single buffered']
    %8 = vsyncpa [#allocation3], 0
    %9 = vsyncpa [#allocation4], 0
    // Predicated region
    $region2: #{tpu_custom_call.1} parent=1 // pred_check
      _
    $region3: #{tpu_custom_call.1} parent=1 // pred_check_branch
      %11 = sbr.rel (0) target = $region5
    $region4: #{tpu_custom_call.1} parent=1 // pred_region
      %s13 = ssub.s32 256, 256
      %14 = vsyncadd [#allocation3], %s13
      %s15 = sshll.u32 [#allocation2], 4
      %s16 = int_to_ptr.vmem [resolvable:$true] %s15
      %21 = dma.hbm_to_vmem [thread:$0]  %s0, 256, %s16, [#allocation3], 128, 128, 8
    $region5: #{tpu_custom_call.1} parent=1 // pred_fallthru
      _
    // Predicated region
    $region6: #{tpu_custom_call.1} parent=1 // pred_check
      _
    $region7: #{tpu_custom_call.1} parent=1 // pred_check_branch
      %23 = sbr.rel (0) target = $region9
    $region8: #{tpu_custom_call.1} parent=1 // pred_region
      _
    $region9: #{tpu_custom_call.1} parent=1 // pred_fallthru
      _
    // Predicated region
    $region10: #{tpu_custom_call.1} parent=1 // pred_check
      _
    $region11: #{tpu_custom_call.1} parent=1 // pred_check_branch
      %25 = sbr.rel (0) target = $region13
    $region12: #{tpu_custom_call.1} parent=1 // pred_region
      _
    $region13: #{tpu_custom_call.1} parent=1 // pred_fallthru
      _
    // Predicated region
    $region14: #{tpu_custom_call.1} parent=1 // pred_check
      _
    $region15: #{tpu_custom_call.1} parent=1 // pred_check_branch
      %27 = sbr.rel (0) target = $region17
    $region16: #{tpu_custom_call.1} parent=1 // pred_region
      %28 = dma.done [#allocation3], 256
    $region17: #{tpu_custom_call.1} parent=1 // pred_fallthru
      _
    %v29 = vld [vmem:[#allocation2] sm:$0xff]
    %v30 = vld [vmem:[#allocation2 + $0x8] sm:$0xff]
    %31 = vadd.xlane.f32.xlu0 %v29
    %v32 = vpop.xlane.xlu0 %31
    %33 = vadd.xlane.f32.xlu0 %v30
    %v34 = vpop.xlane.xlu0 %33
    %v35 = vrcp.pop 128.0
    %v36 = vmul.f32 %v32, %v35
    %v37 = vmul.f32 %v34, %v35
    %v38 = vsub.f32 %v29, %v36
    %v39 = vsub.f32 %v30, %v37
    %v40 = vmul.f32 %v38, %v38
    %v41 = vmul.f32 %v39, %v39
    %42 = vadd.xlane.f32.xlu0 %v40
    %v43 = vpop.xlane.xlu0 %42
    %44 = vadd.xlane.f32.xlu0 %v41
    %v45 = vpop.xlane.xlu0 %44
    %v46 = vmul.f32 %v43, %v35
    %v47 = vmul.f32 %v45, %v35
    %v48 = vadd.f32 %v46, 1e-05
    %v49 = vadd.f32 %v47, 1e-05
    %v50 = vrsqrt.pop %v48
    %v51 = vrsqrt.pop %v49
    %v52 = vmul.f32 %v38, %v50
    %v53 = vmul.f32 %v39, %v51
    %v54 = vld [vmem:[%s1] sm:$0x1]
    %v56 = vlaneseq
    %v57 = vshrl.u32 %v56, 7
    %v58 = vsub.s32 0, %v57
    %v59 = vrot.slane %v54, %v58
    %v61 = vmul.f32 %v52, %v59
    %v62 = vmul.f32 %v53, %v59
    %v63 = vld [vmem:[%s2] sm:$0x1]
    %v65 = vlaneseq
    %v66 = vshrl.u32 %v65, 7
    %v67 = vsub.s32 0, %v66
    %v68 = vrot.slane %v63, %v67
    %v70 = vadd.f32 %v61, %v68
    %v71 = vadd.f32 %v62, %v68
    %72 = vst [vmem:[#allocation5] sm:$0xff] %v70
    %73 = vst [vmem:[#allocation5 + $0x8] sm:$0xff] %v71
    // Predicated region
    $region18: #{tpu_custom_call.1} parent=1 // pred_check
      _
    $region19: #{tpu_custom_call.1} parent=1 // pred_check_branch
      %75 = sbr.rel (0) target = $region21
    $region20: #{tpu_custom_call.1} parent=1 // pred_region
      %s77 = ssub.s32 256, 256
      %78 = vsyncadd [#allocation4], %s77
      %s79 = sshll.u32 [#allocation5], 4
      %s80 = int_to_ptr.vmem [resolvable:$true] %s79
      %85 = dma.vmem_to_hbm [thread:$0]  %s80, 256, %s3, [#allocation4], 128, 128, 8
    $region21: #{tpu_custom_call.1} parent=1 // pred_fallthru
      _
    // Predicated region
    $region22: #{tpu_custom_call.1} parent=1 // pred_check
      _
    $region23: #{tpu_custom_call.1} parent=1 // pred_check_branch
      %87 = sbr.rel (0) target = $region25
    $region24: #{tpu_custom_call.1} parent=1 // pred_region
      %88 = dma.done [#allocation4], 256
    $region25: #{tpu_custom_call.1} parent=1 // pred_fallthru
      _
    %89 = vsyncpa [#allocation3], 1
    %90 = vsyncpa [#allocation4], 1

</llo_original>
